<compile_context>
chip_gen: v5e
topology: v5e:2x2
jax: 0.10.0
libtpu: 0.0.40
codegen_flags: <defaults>
</compile_context>

<pallas_src>
import functools

import jax
import jax.numpy as jnp
from jax import lax
from jax.experimental import pallas as pl
from jax.experimental.pallas import tpu as pltpu

_LANE = 128
_SUBLANE = 8
_MAX_TILE_N = 2048                 # f32 lane chunk -> 8 KiB per row slice
_MAX_TILE_M = 1024                 # cap on rows per block
_BLOCK_BYTES = 2 * 1024 * 1024     # ~2 MiB input block (x2 for double-buffering)


def _round_up(x, m):
    return ((x + m - 1) // m) * m


def _pad_value(dtype):
    if jnp.issubdtype(dtype, jnp.floating):
        return float("inf")
    return int(jnp.iinfo(dtype).max)


def _choose_tiles(m, n, itemsize):
    """Pick (TILE_M, TILE_N, padded M, padded N) satisfying the (8,128) rule."""
    # Lane (reduce) axis: full extent if small, else 128-aligned chunks.
    if n <= _MAX_TILE_N:
        tile_n, n_pad = n, n
    else:
        tile_n = _MAX_TILE_N                      # multiple of 128
        n_pad = _round_up(n, tile_n)
    # Sublane (row) axis: keep the block around _BLOCK_BYTES.
    rows_budget = max(_SUBLANE, _BLOCK_BYTES // max(1, tile_n * itemsize))
    rows_budget = min(rows_budget, _MAX_TILE_M)
    if m <= rows_budget:
        tile_m, m_pad = m, m
    else:
        tile_m = (rows_budget // _SUBLANE) * _SUBLANE
        m_pad = _round_up(m, tile_m)
    return tile_m, tile_n, m_pad, n_pad


def _argmin_rows_kernel(x_ref, val_ref, idx_ref, min_sc, arg_sc):
    """One (TILE_M, TILE_N) chunk: carry running (min, first-argmin) over N chunks."""
    k = pl.program_id(1)
    x = x_ref[...]
    tm, tn = x.shape

    chunk_min = jnp.min(x, axis=-1, keepdims=True)              # (TM, 1)
    col = lax.broadcasted_iota(jnp.int32, (tm, tn), 1)           # column ids
    # First index attaining the chunk min (non-min positions -> sentinel tn).
    # isnan() keeps NaN rows pointing at the first NaN within a chunk.
    cand = jnp.where((x == chunk_min) | jnp.isnan(x), col, jnp.int32(tn))
    chunk_arg = jnp.min(cand, axis=-1, keepdims=True) + k * tn   # global col index

    @pl.when(k == 0)
    def _():
        min_sc[...] = chunk_min
        arg_sc[...] = chunk_arg

    @pl.when(k > 0)
    def _():
        # Strict '<': earlier chunk wins ties -> first-index semantics preserved.
        better = chunk_min < min_sc[...]
        min_sc[...] = jnp.where(better, chunk_min, min_sc[...])
        arg_sc[...] = jnp.where(better, chunk_arg, arg_sc[...])

    @pl.when(k == pl.num_programs(1) - 1)
    def _():
        val_ref[...] = min_sc[...]
        idx_ref[...] = arg_sc[...]


def _argmin_2d(x2d):
    """(M, N) array -> ((M, 1) row-min values, (M, 1) int32 argmin indices)."""
    m, n = x2d.shape
    dtype = x2d.dtype
    tile_m, tile_n, m_pad, n_pad = _choose_tiles(m, n, dtype.itemsize)

    if (m_pad, n_pad) != (m, n):
        # +inf (or int max) padding never wins and never breaks first-index ties
        # (padded columns sit at larger indices than all real columns).
        x2d = jnp.pad(x2d, ((0, m_pad - m), (0, n_pad - n)),
                      constant_values=_pad_value(dtype))

    grid = (m_pad // tile_m, n_pad // tile_n)
    vals, idxs = pl.pallas_call(
        _argmin_rows_kernel,
        out_shape=(jax.ShapeDtypeStruct((m_pad, 1), dtype),
                   jax.ShapeDtypeStruct((m_pad, 1), jnp.int32)),
        grid=grid,
        in_specs=[pl.BlockSpec((tile_m, tile_n), lambda i, k: (i, k))],
        out_specs=(pl.BlockSpec((tile_m, 1), lambda i, k: (i, 0)),
                   pl.BlockSpec((tile_m, 1), lambda i, k: (i, 0))),
        scratch_shapes=[pltpu.VMEM((tile_m, 1), dtype),
                        pltpu.VMEM((tile_m, 1), jnp.int32)],
        compiler_params=pltpu.CompilerParams(
            dimension_semantics=("parallel", "arbitrary")),
    )(x2d)
    return vals[:m], idxs[:m]


def _global_slab_width(total):
    """Lane-dense width (multiple of 128) aiming for >= 8 rows, capped at 2048."""
    if total <= _LANE:
        return total
    w = (total // _SUBLANE) // _LANE * _LANE
    return max(_LANE, min(_MAX_TILE_N, w))


@functools.partial(jax.jit, static_argnames=("dim", "keep_dims"))
def argmin_module(x, dim=None, keep_dims=True):
    """Mirrors ArgMinModule.forward (including its `if self.dim:` check)."""
    if dim:  # same truthiness check as the PyTorch module (dim=0 -> global path)
        x_moved = jnp.moveaxis(x, dim, -1)            # put reduce axis last
        lead_shape = x_moved.shape[:-1]
        n = x_moved.shape[-1]
        m = 1
        for s in lead_shape:
            m *= s
        _, idx = _argmin_2d(x_moved.reshape(m, n))    # (M, 1) int32
        out = idx.reshape(lead_shape)                 # reduced shape (axis gone)
        if keep_dims:
            out = jnp.expand_dims(out, axis=dim)      # put size-1 axis back
        return out
    else:
        # Global argmin: dense (rows, W) slab instead of a sublane-sparse (1, T) row.
        flat = x.reshape(-1)
        total = flat.shape[0]
        w = _global_slab_width(total)
        rows = -(-total // w)
        pad = rows * w - total
        if pad:
            flat = jnp.pad(flat, (0, pad), constant_values=_pad_value(x.dtype))
        vals, idxs = _argmin_2d(flat.reshape(rows, w))
        vals = vals.reshape(-1)
        idxs = idxs.reshape(-1)
        # Tiny (rows,) combine; jnp.argmin keeps the first-index tie-break and the
        # row order matches flat-index order, so global first-index is preserved.
        best_row = jnp.argmin(vals)
        return (best_row.astype(jnp.int32) * w + idxs[best_row]).reshape(())


if __name__ == "__main__":
    key = jax.random.PRNGKey(0)
    x = jax.random.normal(key, (2, 4, 16, 16), dtype=jnp.float32)

    # Case 1: global argmin (dim=None branch of the module).
    out_global = jax.block_until_ready(argmin_module(x, dim=None))
    assert out_global.shape == ()
    assert int(out_global) == int(jnp.argmin(x))

    # Case 2: argmin over channel dim (dim=1, keepDims=True).
    out_c = jax.block_until_ready(argmin_module(x, dim=1, keep_dims=True))
    assert out_c.shape == (2, 1, 16, 16)
    assert bool(jnp.all(out_c == jnp.argmin(x, axis=1, keepdims=True)))

    # Case 3: argmin over last spatial dim (dim=3, keepDims=False).
    out_w = jax.block_until_ready(argmin_module(x, dim=3, keep_dims=False))
    assert out_w.shape == (2, 4, 16)
    assert bool(jnp.all(out_w == jnp.argmin(x, axis=3)))

    # Case 4: exercises the multi-tile row axis (parallel grid axis > 1).
    x2 = jax.random.normal(jax.random.PRNGKey(1), (4, 8, 64, 48), dtype=jnp.float32)
    out2 = jax.block_until_ready(argmin_module(x2, dim=3, keep_dims=False))
    assert bool(jnp.all(out2 == jnp.argmin(x2, axis=3)))

    # Case 5: exercises the chunked-N reduction axis (+inf padded tail, carry merge).
    x3 = jax.random.normal(jax.random.PRNGKey(2), (4, 3000), dtype=jnp.float32)
    out3 = jax.block_until_ready(argmin_module(x3, dim=1, keep_dims=False))
    assert bool(jnp.all(out3 == jnp.argmin(x3, axis=1)))

    print("KERNEL_OK")
</pallas_src>

<mosaic_0001>
module attributes {stable_mosaic.version = 11 : i64} {
  func.func @_argmin_rows_kernel(%arg0: i32, %arg1: i32, %arg2: memref<8x256xf32, #tpu.memory_space<vmem>>, %arg3: memref<8x1xf32, #tpu.memory_space<vmem>>, %arg4: memref<8x1xi32, #tpu.memory_space<vmem>>, %arg5: memref<8x1xf32, #tpu.memory_space<vmem>>, %arg6: memref<8x1xi32, #tpu.memory_space<vmem>>) attributes {dimension_semantics = [#tpu.dimension_semantics<parallel>, #tpu.dimension_semantics<arbitrary>], iteration_bounds = array<i64: 1, 1>, scalar_prefetch = 0 : i64, scratch_operands = 2 : i64, tpu.core_type = #tpu.core_type<tc>, window_params = [{transform_indices = @transform_0, window_bounds = array<i64: 8, 256>}, {transform_indices = @transform_1, window_bounds = array<i64: 8, 1>}, {transform_indices = @transform_2, window_bounds = array<i64: 8, 1>}]} {
    %c0 = arith.constant 0 : index
    %c0_0 = arith.constant 0 : index
    %0 = vector.load %arg2[%c0, %c0_0] : memref<8x256xf32, #tpu.memory_space<vmem>>, vector<8x256xf32>
    %cst = arith.constant dense<0x7F800000> : vector<8xf32>
    %1 = vector.multi_reduction <minimumf>, %0, %cst [1] : vector<8x256xf32> to vector<8xf32>
    %2 = vector.shape_cast %1 : vector<8xf32> to vector<8x1xf32>
    %3 = tpu.iota {dimensions = array<i32: 1>} : vector<8x256xi32>
    %4 = vector.broadcast %2 : vector<8x1xf32> to vector<8x256xf32>
    %5 = arith.cmpf oeq, %0, %4 : vector<8x256xf32>
    %6 = arith.cmpf one, %0, %0 : vector<8x256xf32>
    %7 = arith.ori %5, %6 : vector<8x256xi1>
    %c256_i32 = arith.constant 256 : i32
    %8 = vector.broadcast %c256_i32 : i32 to vector<8x256xi32>
    %9 = arith.select %7, %3, %8 : vector<8x256xi1>, vector<8x256xi32>
    %cst_1 = arith.constant dense<2147483647> : vector<8xi32>
    %10 = vector.multi_reduction <minsi>, %9, %cst_1 [1] : vector<8x256xi32> to vector<8xi32>
    %11 = vector.shape_cast %10 : vector<8xi32> to vector<8x1xi32>
    %c256_i32_2 = arith.constant 256 : i32
    %12 = arith.muli %arg1, %c256_i32_2 : i32
    %13 = vector.broadcast %12 : i32 to vector<8x1xi32>
    %14 = arith.addi %11, %13 : vector<8x1xi32>
    %c0_i32 = arith.constant 0 : i32
    %15 = arith.cmpi eq, %arg1, %c0_i32 : i32
    %16 = arith.extui %15 : i1 to i32
    %c0_i32_3 = arith.constant 0 : i32
    %17 = arith.cmpi ne, %16, %c0_i32_3 : i32
    scf.if %17 {
      %c0_8 = arith.constant 0 : index
      %c0_9 = arith.constant 0 : index
      %24 = vector.load %arg5[%c0_8, %c0_9] : memref<8x1xf32, #tpu.memory_space<vmem>>, vector<8x1xf32>
      tpu.vector_store %arg5[%c0_8, %c0_9], %2 {strides = array<i32>} : memref<8x1xf32, #tpu.memory_space<vmem>>, vector<8x1xf32>,
      %c0_10 = arith.constant 0 : index
      %c0_11 = arith.constant 0 : index
      %25 = vector.load %arg6[%c0_10, %c0_11] : memref<8x1xi32, #tpu.memory_space<vmem>>, vector<8x1xi32>
      tpu.vector_store %arg6[%c0_10, %c0_11], %14 {strides = array<i32>} : memref<8x1xi32, #tpu.memory_space<vmem>>, vector<8x1xi32>,
    } else {
    }
    %c0_i32_4 = arith.constant 0 : i32
    %18 = arith.cmpi sgt, %arg1, %c0_i32_4 : i32
    %19 = arith.extui %18 : i1 to i32
    %c0_i32_5 = arith.constant 0 : i32
    %20 = arith.cmpi ne, %19, %c0_i32_5 : i32
    scf.if %20 {
      %c0_8 = arith.constant 0 : index
      %c0_9 = arith.constant 0 : index
      %24 = vector.load %arg5[%c0_8, %c0_9] : memref<8x1xf32, #tpu.memory_space<vmem>>, vector<8x1xf32>
      %25 = arith.cmpf olt, %2, %24 : vector<8x1xf32>
      %c0_10 = arith.constant 0 : index
      %c0_11 = arith.constant 0 : index
      %26 = vector.load %arg5[%c0_10, %c0_11] : memref<8x1xf32, #tpu.memory_space<vmem>>, vector<8x1xf32>
      %27 = arith.select %25, %2, %26 : vector<8x1xi1>, vector<8x1xf32>
      %c0_12 = arith.constant 0 : index
      %c0_13 = arith.constant 0 : index
      %28 = vector.load %arg5[%c0_12, %c0_13] : memref<8x1xf32, #tpu.memory_space<vmem>>, vector<8x1xf32>
      tpu.vector_store %arg5[%c0_12, %c0_13], %27 {strides = array<i32>} : memref<8x1xf32, #tpu.memory_space<vmem>>, vector<8x1xf32>,
      %c0_14 = arith.constant 0 : index
      %c0_15 = arith.constant 0 : index
      %29 = vector.load %arg6[%c0_14, %c0_15] : memref<8x1xi32, #tpu.memory_space<vmem>>, vector<8x1xi32>
      %30 = arith.select %25, %14, %29 : vector<8x1xi1>, vector<8x1xi32>
      %c0_16 = arith.constant 0 : index
      %c0_17 = arith.constant 0 : index
      %31 = vector.load %arg6[%c0_16, %c0_17] : memref<8x1xi32, #tpu.memory_space<vmem>>, vector<8x1xi32>
      tpu.vector_store %arg6[%c0_16, %c0_17], %30 {strides = array<i32>} : memref<8x1xi32, #tpu.memory_space<vmem>>, vector<8x1xi32>,
    } else {
    }
    %c0_i32_6 = arith.constant 0 : i32
    %21 = arith.cmpi eq, %arg1, %c0_i32_6 : i32
    %22 = arith.extui %21 : i1 to i32
    %c0_i32_7 = arith.constant 0 : i32
    %23 = arith.cmpi ne, %22, %c0_i32_7 : i32
    scf.if %23 {
      %c0_8 = arith.constant 0 : index
      %c0_9 = arith.constant 0 : index
      %24 = vector.load %arg5[%c0_8, %c0_9] : memref<8x1xf32, #tpu.memory_space<vmem>>, vector<8x1xf32>
      %c0_10 = arith.constant 0 : index
      %c0_11 = arith.constant 0 : index
      %25 = vector.load %arg3[%c0_10, %c0_11] : memref<8x1xf32, #tpu.memory_space<vmem>>, vector<8x1xf32>
      tpu.vector_store %arg3[%c0_10, %c0_11], %24 {strides = array<i32>} : memref<8x1xf32, #tpu.memory_space<vmem>>, vector<8x1xf32>,
      %c0_12 = arith.constant 0 : index
      %c0_13 = arith.constant 0 : index
      %26 = vector.load %arg6[%c0_12, %c0_13] : memref<8x1xi32, #tpu.memory_space<vmem>>, vector<8x1xi32>
      %c0_14 = arith.constant 0 : index
      %c0_15 = arith.constant 0 : index
      %27 = vector.load %arg4[%c0_14, %c0_15] : memref<8x1xi32, #tpu.memory_space<vmem>>, vector<8x1xi32>
      tpu.vector_store %arg4[%c0_14, %c0_15], %26 {strides = array<i32>} : memref<8x1xi32, #tpu.memory_space<vmem>>, vector<8x1xi32>,
    } else {
    }
    return
  }
  func.func @transform_0(%arg0: i32, %arg1: i32) -> (i32, i32) {
    %c0_i32 = arith.constant 0 : i32
    return %arg0, %arg1 : i32, i32
  }
  func.func @transform_1(%arg0: i32, %arg1: i32) -> (i32, i32) {
    %c0_i32 = arith.constant 0 : i32
    %c0_i32_0 = arith.constant 0 : i32
    return %arg0, %c0_i32 : i32, i32
  }
  func.func @transform_2(%arg0: i32, %arg1: i32) -> (i32, i32) {
    %c0_i32 = arith.constant 0 : i32
    %c0_i32_0 = arith.constant 0 : i32
    return %arg0, %c0_i32 : i32, i32
  }
}

</mosaic_0001>

<llo_original>
// kernel: argmin_module.1
$region0: #{argmin_module.1}
  #allocation0 [shape = 'u32[]', space=smem, size = 0x4, offset = 0x4, fixed_abs, tag = 'smem constant byte address 0x4 - core index']
  #allocation1 [shape = 'u32[72,128]{1,0:T(1,128)}', space=vmem, size = 0x9000, scoped, tag = 'internal scratch']
  #allocation2 [shape = 'f32[8,1]{1,0:T(8,128)}', space=vmem, size = 0x1000, scoped, tag = 'scratch operand']
  #allocation3 [shape = 's32[8,1]{1,0:T(8,128)}', space=vmem, size = 0x1000, scoped, tag = 'scratch operand']
  %s0 = inlined_call_operand.vmem [shape: f32[8,256], index: 0, kind: input, shape index: {}]
  %s1 = inlined_call_operand.vmem [shape: f32[8,1], index: 1, kind: output, shape index: {0}]
  %s2 = inlined_call_operand.vmem [shape: s32[8,1], index: 2, kind: output, shape index: {1}]
  %3 = xla_tuple %s1, %s2
  %s4 = sld [smem:[#allocation0]]
  $region34: #{argmin_module.1} parent=0
    _
  %s6 = ssub.s32 1, %s4
  %s7 = scalar_select 0, %s6, %s4
  // Predicated region
  $region2: #{argmin_module.1} parent=0 // pred_check
    _
  $region3: #{argmin_module.1} parent=0 // pred_check_branch
    %9 = sbr.rel (0) target = $region5
  $region4: #{argmin_module.1} parent=0 // pred_region
    _
  $region5: #{argmin_module.1} parent=0 // pred_fallthru
    _
  %v10 = vld [vmem:[%s0] sm:$0xff]
  %v11 = vld [vmem:[%s0 + $0x8] sm:$0xff]
  %v12 = vmin.f32 %v10, %v11
  %13 = vmin.xlane.f32.xlu0 %v12
  %v14 = vpop.xlane.xlu0 %13
  %v15 = vlaneseq
  %v16 = vand.u32 %v15, 127
  %v17 = vadd.s32 %v16, 128
  %vm18 = vcmp.eq.f32.partialorder %v10, %v14
  %vm19 = vcmp.eq.f32.partialorder %v11, %v14
  %vm20 = vcmp.ne.f32.partialorder %v10, %v10
  %vm21 = vcmp.ne.f32.partialorder %v11, %v11
  %vm22 = vmor %vm18, %vm20
  %vm23 = vmor %vm19, %vm21
  %v24 = vsel %vm22, %v16, 256
  %v25 = vsel %vm23, %v17, 256
  %vm26 = vcmp.lt.s32.totalorder %v24, %v25
  %v27 = vsel %vm26, %v24, %v25
  %v28 = vand.u32 %v27, 65535
  %v29 = vshra.s32 %v27, 16
  %v30 = vcvt.s32.f32 %v28
  %v31 = vcvt.s32.f32 %v29
  %32 = vmin.xlane.f32.xlu0 %v31
  %v33 = vpop.xlane.xlu0 %32
  %vm34 = vcmp.eq.f32.partialorder %v31, %v33
  %v35 = vsel %vm34, %v30, inf
  %36 = vmin.xlane.f32.xlu0 %v35
  %v37 = vpop.xlane.xlu0 %36
  %v38 = vcvt.f32.s32 %v37
  %v39 = vcvt.f32.s32 %v33
  %v40 = vshll.u32 %v39, 16
  %v41 = vadd.s32 %v40, %v38
  %s42 = smul.u32 0, 256
  %v43 = vstv %s42
  %v44 = vadd.s32 %v41, %v43
  %p45 = scmp.eq.s32.totalorder 0, 0
  // Predicated region
  $region6: #{argmin_module.1} parent=0 // pred_check
    %p46 = pneg %p45
  $region7: #{argmin_module.1} parent=0 // pred_check_branch
    %48 = sbr.rel (%p46) target = $region9
  $region8: #{argmin_module.1} parent=0 // pred_region
    %vm49 = vcmask 7168
    %50 = vst.msk [vmem:[#allocation2] sm:$0xff] %vm49, %v14
    %51 = vst.msk [vmem:[#allocation3] sm:$0xff] %vm49, %v44
  $region9: #{argmin_module.1} parent=0 // pred_fallthru
    _
  %p52 = scmp.gt.s32.totalorder 0, 0
  // Predicated region
  $region10: #{argmin_module.1} parent=0 // pred_check
    %p53 = pneg %p52
  $region11: #{argmin_module.1} parent=0 // pred_check_branch
    %55 = sbr.rel (%p53) target = $region13
  $region12: #{argmin_module.1} parent=0 // pred_region
    %v56 = vld [vmem:[#allocation2] sm:$0xff]
    %vm57 = vcmp.lt.f32.partialorder %v14, %v56
    %v58 = vsel %vm57, %v14, %v56
    %vm59 = vcmask 7168
    %60 = vst.msk [vmem:[#allocation2] sm:$0xff] %vm59, %v58
    %v61 = vld [vmem:[#allocation3] sm:$0xff]
    %v62 = vsel %vm57, %v44, %v61
    %63 = vst.msk [vmem:[#allocation3] sm:$0xff] %vm59, %v62
  $region13: #{argmin_module.1} parent=0 // pred_fallthru
    _
  // Predicated region
  $region14: #{argmin_module.1} parent=0 // pred_check
    %p64 = pneg %p45
  $region15: #{argmin_module.1} parent=0 // pred_check_branch
    %66 = sbr.rel (%p64) target = $region17
  $region16: #{argmin_module.1} parent=0 // pred_region
    %v67 = vld [vmem:[#allocation2] sm:$0xff]
    %vm68 = vcmask 7168
    %69 = vst.msk [vmem:[%s1] sm:$0xff] %vm68, %v67
    %v70 = vld [vmem:[#allocation3] sm:$0xff]
    %71 = vst.msk [vmem:[%s2] sm:$0xff] %vm68, %v70
  $region17: #{argmin_module.1} parent=0 // pred_fallthru
    _
  // Predicated region
  $region18: #{argmin_module.1} parent=0 // pred_check
    _
  $region19: #{argmin_module.1} parent=0 // pred_check_branch
    %73 = sbr.rel (0) target = $region21
  $region20: #{argmin_module.1} parent=0 // pred_region
    _
  $region21: #{argmin_module.1} parent=0 // pred_fallthru
    _
  // Predicated region
  $region22: #{argmin_module.1} parent=0 // pred_check
    _
  $region23: #{argmin_module.1} parent=0 // pred_check_branch
    %75 = sbr.rel (0) target = $region25
  $region24: #{argmin_module.1} parent=0 // pred_region
    _
  $region25: #{argmin_module.1} parent=0 // pred_fallthru
    _
  // Predicated region
  $region26: #{argmin_module.1} parent=0 // pred_check
    _
  $region27: #{argmin_module.1} parent=0 // pred_check_branch
    %77 = sbr.rel (0) target = $region29
  $region28: #{argmin_module.1} parent=0 // pred_region
    _
  $region29: #{argmin_module.1} parent=0 // pred_fallthru
    _
  // Predicated region
  $region30: #{argmin_module.1} parent=0 // pred_check
    _
  $region31: #{argmin_module.1} parent=0 // pred_check_branch
    %79 = sbr.rel (0) target = $region33
  $region32: #{argmin_module.1} parent=0 // pred_region
    _
  $region33: #{argmin_module.1} parent=0 // pred_fallthru
    _

</llo_original>
